<compile_context>
chip_gen: v7x
topology: tpu7x:2x2x1
jax: 0.10.0
libtpu: 0.0.40
codegen_flags: <defaults>
</compile_context>

<pallas_src>
import jax
import jax.numpy as jnp
from jax.experimental import pallas as pl
from jax.experimental.pallas import tpu as pltpu

_LANE = 128


def _round_up(v, m):
    return (v + m - 1) // m * m


def _disc_kernel(x_ref, w1_ref, b1_ref, w2_ref, b2_ref, w3_ref, b3_ref, o_ref):
    """One (TM, pacdim) row tile -> one lane-dense (1, TM) score row."""
    # TODO(synk): training-mode Dropout(0.5) (pltpu.prng_* random mask) not
    # implemented; eval-mode identity is used.
    # Layer 1: Linear (bf16 MXU inputs, f32 accumulation) + LeakyReLU(0.2)
    h = jnp.dot(x_ref[...], w1_ref[...], preferred_element_type=jnp.float32)
    h = h + b1_ref[...]
    h = jnp.where(h > 0, h, 0.2 * h)
    # Layer 2: Linear + LeakyReLU(0.2)
    h = jnp.dot(h.astype(w2_ref.dtype), w2_ref[...],
                preferred_element_type=jnp.float32)
    h = h + b2_ref[...]
    h = jnp.where(h > 0, h, 0.2 * h)
    # Final Linear(dim -> 1): contract (1, H) with (TM, H) along H so the output
    # is a lane-dense (1, TM) row instead of a masked (TM, 1) column.
    o = jax.lax.dot_general(
        w3_ref[...], h,
        dimension_numbers=(((1,), (1,)), ((), ())),
        preferred_element_type=jnp.float32)
    o_ref[...] = (o + b3_ref[...]).astype(o_ref.dtype)


def preprocess_params(params, compute_dtype=jnp.bfloat16):
    """Pad hidden widths to multiples of 128 and cast the large weights.

    Padded hidden columns get zero weight + zero bias, stay zero through
    LeakyReLU, and the matching zero-padded rows of the next layer contribute
    nothing, so the math is identical to the unpadded network.
    """
    (w1, b1), (w2, b2), (w3, b3) = params
    h1, h2 = w1.shape[1], w2.shape[1]
    h1p, h2p = _round_up(h1, _LANE), _round_up(h2, _LANE)

    w1p = jnp.pad(w1, ((0, 0), (0, h1p - h1))).astype(compute_dtype)
    b1p = jnp.pad(b1, ((0, 0), (0, h1p - h1))).astype(jnp.float32)
    w2p = jnp.pad(w2, ((0, h1p - h1), (0, h2p - h2))).astype(compute_dtype)
    b2p = jnp.pad(b2, ((0, 0), (0, h2p - h2))).astype(jnp.float32)
    # Final projection kept in f32 (tiny) and stored as a (1, h2p) row.
    w3p = jnp.pad(w3, ((0, h2p - h2), (0, 0))).astype(jnp.float32).T
    b3p = b3.astype(jnp.float32)
    return (w1p, b1p, w2p, b2p, w3p, b3p)


def discriminator_forward(x, params, pac, compute_dtype=jnp.bfloat16):
    """x: (N, input_dim) float32.  Returns (N // pac, 1) float32."""
    n, input_dim = x.shape
    assert n % pac == 0, "batch must be divisible by pac"
    pacdim = input_dim * pac
    rows = n // pac
    xp = x.reshape(rows, pacdim)  # glue reshape in plain JAX

    w1, b1, w2, b2, w3, b3 = preprocess_params(params, compute_dtype)

    # Row tiling: single tile for small batches, else 512-row tiles (multiple of
    # both the 8-sublane and 128-lane granules; comfortably fits VMEM even on
    # v7x's smaller 64 MiB when double-buffered).
    if rows <= 512:
        tm = _round_up(rows, 8)
    else:
        tm = 512
    rows_p = _round_up(rows, tm)
    if rows_p != rows:
        xp = jnp.pad(xp, ((0, rows_p - rows), (0, 0)))
    xp = xp.astype(compute_dtype)
    n_tiles = rows_p // tm

    def _const_spec(arr):
        nd = arr.ndim
        return pl.BlockSpec(arr.shape, lambda i, _nd=nd: (0,) * _nd)

    out = pl.pallas_call(
        _disc_kernel,
        out_shape=jax.ShapeDtypeStruct((1, rows_p), jnp.float32),
        grid=(n_tiles,),
        in_specs=[
            pl.BlockSpec((tm, pacdim), lambda i: (i, 0)),   # streamed row tiles
            _const_spec(w1), _const_spec(b1),               # weights: resident,
            _const_spec(w2), _const_spec(b2),               # DMA'd once
            _const_spec(w3), _const_spec(b3),
        ],
        out_specs=pl.BlockSpec((1, tm), lambda i: (0, i)),  # lane-dense output
        compiler_params=pltpu.CompilerParams(
            dimension_semantics=("parallel",)),             # megacore / 2-TC
    )(xp, w1, b1, w2, b2, w3, b3)

    return out[0, :rows].reshape(rows, 1)


def init_params(key, input_dim, discriminator_dim, pac):
    """Deterministic Linear weights/biases (uniform, PyTorch-like fan_in scale).

    Note: weights are stored (in, out) and used as x @ W; real PyTorch
    nn.Linear checkpoints ((out, in)) would need a transpose before use.
    """
    dims = [input_dim * pac] + list(discriminator_dim) + [1]
    params = []
    for i in range(len(dims) - 1):
        key, kw, kb = jax.random.split(key, 3)
        fan_in = dims[i]
        bound = 1.0 / jnp.sqrt(fan_in)
        w = jax.random.uniform(kw, (dims[i], dims[i + 1]), jnp.float32, -bound, bound)
        b = jax.random.uniform(kb, (1, dims[i + 1]), jnp.float32, -bound, bound)
        params.append((w, b))
    return params


def reference_forward_f32(x, params, pac):
    """Pure f32 reference with the original (unpadded) parameters."""
    n, input_dim = x.shape
    h = x.reshape(n // pac, input_dim * pac)
    (w1, b1), (w2, b2), (w3, b3) = params
    h = h @ w1 + b1
    h = jnp.where(h > 0, h, 0.2 * h)
    h = h @ w2 + b2
    h = jnp.where(h > 0, h, 0.2 * h)
    return h @ w3 + b3


def reference_forward_matched(x, params, pac, compute_dtype=jnp.bfloat16):
    """Same math at the kernel's (bf16-rounded) precision, in plain JAX."""
    n, input_dim = x.shape
    xp = x.reshape(n // pac, input_dim * pac)
    w1, b1, w2, b2, w3, b3 = preprocess_params(params, compute_dtype)
    f32 = jnp.float32
    h = xp.astype(compute_dtype).astype(f32) @ w1.astype(f32) + b1
    h = jnp.where(h > 0, h, 0.2 * h)
    h = h.astype(compute_dtype).astype(f32) @ w2.astype(f32) + b2
    h = jnp.where(h > 0, h, 0.2 * h)
    return h @ w3.T + b3


if __name__ == "__main__":
    key = jax.random.PRNGKey(0)
    pac = 10
    input_dim = 8
    discriminator_dim = (32, 32)
    batch = 20  # N % pac == 0  ->  2 packed rows

    k_x, k_p = jax.random.split(key)
    x = jax.random.normal(k_x, (batch, input_dim), jnp.float32)
    params = init_params(k_p, input_dim, discriminator_dim, pac)

    out = discriminator_forward(x, params, pac)
    out = jax.block_until_ready(out)
    assert out.shape == (batch // pac, 1)

    # Tight check against a plain-JAX reference at matched (bf16-rounded) precision.
    ref_matched = reference_forward_matched(x, params, pac)
    assert jnp.allclose(out, ref_matched, atol=2e-3, rtol=2e-3), (
        float(jnp.max(jnp.abs(out - ref_matched))))

    # Loose check against the full-f32 PyTorch-semantics reference.
    ref_f32 = reference_forward_f32(x, params, pac)
    assert jnp.allclose(out, ref_f32, atol=5e-2, rtol=5e-2), (
        float(jnp.max(jnp.abs(out - ref_f32))))

    print("KERNEL_OK")
</pallas_src>

<mosaic_0001>
module attributes {stable_mosaic.version = 11 : i64} {
  func.func @_disc_kernel(%arg0: i32, %arg1: memref<8x80xbf16, #tpu.memory_space<vmem>>, %arg2: memref<80x128xbf16, #tpu.memory_space<vmem>>, %arg3: memref<1x128xf32, #tpu.memory_space<vmem>>, %arg4: memref<128x128xbf16, #tpu.memory_space<vmem>>, %arg5: memref<1x128xf32, #tpu.memory_space<vmem>>, %arg6: memref<1x128xf32, #tpu.memory_space<vmem>>, %arg7: memref<1x1xf32, #tpu.memory_space<vmem>>, %arg8: memref<1x8xf32, #tpu.memory_space<vmem>>) attributes {dimension_semantics = [#tpu.dimension_semantics<parallel>], iteration_bounds = array<i64: 1>, scalar_prefetch = 0 : i64, scratch_operands = 0 : i64, tpu.core_type = #tpu.core_type<tc>, window_params = [{transform_indices = @transform_0, window_bounds = array<i64: 8, 80>}, {pipeline_mode = #tpu.pipeline_mode<synchronous>, transform_indices = @transform_1, window_bounds = array<i64: 80, 128>}, {pipeline_mode = #tpu.pipeline_mode<synchronous>, transform_indices = @transform_2, window_bounds = array<i64: 1, 128>}, {pipeline_mode = #tpu.pipeline_mode<synchronous>, transform_indices = @transform_3, window_bounds = array<i64: 128, 128>}, {pipeline_mode = #tpu.pipeline_mode<synchronous>, transform_indices = @transform_4, window_bounds = array<i64: 1, 128>}, {pipeline_mode = #tpu.pipeline_mode<synchronous>, transform_indices = @transform_5, window_bounds = array<i64: 1, 128>}, {pipeline_mode = #tpu.pipeline_mode<synchronous>, transform_indices = @transform_6, window_bounds = array<i64: 1, 1>}, {transform_indices = @transform_7, window_bounds = array<i64: 1, 8>}]} {
    %c0 = arith.constant 0 : index
    %c0_0 = arith.constant 0 : index
    %0 = vector.load %arg1[%c0, %c0_0] : memref<8x80xbf16, #tpu.memory_space<vmem>>, vector<8x80xbf16>
    %c0_1 = arith.constant 0 : index
    %c0_2 = arith.constant 0 : index
    %1 = vector.load %arg2[%c0_1, %c0_2] : memref<80x128xbf16, #tpu.memory_space<vmem>>, vector<80x128xbf16>
    %cst = arith.constant dense<0.000000e+00> : vector<8x128xf32>
    %2 = tpu.matmul %0, %1, %cst {dimension_numbers = #tpu.dot_dimension_numbers<[1], [0], [0], [1], [0, 0, 1, 1], [], []>} : vector<8x80xbf16>, vector<80x128xbf16>, vector<8x128xf32> -> vector<8x128xf32>
    %c0_3 = arith.constant 0 : index
    %c0_4 = arith.constant 0 : index
    %3 = vector.load %arg3[%c0_3, %c0_4] : memref<1x128xf32, #tpu.memory_space<vmem>>, vector<1x128xf32>
    %4 = vector.broadcast %3 : vector<1x128xf32> to vector<8x128xf32>
    %5 = arith.addf %2, %4 : vector<8x128xf32>
    %cst_5 = arith.constant 0.000000e+00 : f32
    %6 = vector.broadcast %cst_5 : f32 to vector<8x128xf32>
    %7 = arith.cmpf ogt, %5, %6 : vector<8x128xf32>
    %cst_6 = arith.constant 2.000000e-01 : f32
    %8 = vector.broadcast %cst_6 : f32 to vector<8x128xf32>
    %9 = arith.mulf %8, %5 : vector<8x128xf32>
    %10 = arith.select %7, %5, %9 : vector<8x128xi1>, vector<8x128xf32>
    %11 = arith.truncf %10 : vector<8x128xf32> to vector<8x128xbf16>
    %c0_7 = arith.constant 0 : index
    %c0_8 = arith.constant 0 : index
    %12 = vector.load %arg4[%c0_7, %c0_8] : memref<128x128xbf16, #tpu.memory_space<vmem>>, vector<128x128xbf16>
    %cst_9 = arith.constant dense<0.000000e+00> : vector<8x128xf32>
    %13 = tpu.matmul %11, %12, %cst_9 {dimension_numbers = #tpu.dot_dimension_numbers<[1], [0], [0], [1], [0, 0, 1, 1], [], []>} : vector<8x128xbf16>, vector<128x128xbf16>, vector<8x128xf32> -> vector<8x128xf32>
    %c0_10 = arith.constant 0 : index
    %c0_11 = arith.constant 0 : index
    %14 = vector.load %arg5[%c0_10, %c0_11] : memref<1x128xf32, #tpu.memory_space<vmem>>, vector<1x128xf32>
    %15 = vector.broadcast %14 : vector<1x128xf32> to vector<8x128xf32>
    %16 = arith.addf %13, %15 : vector<8x128xf32>
    %cst_12 = arith.constant 0.000000e+00 : f32
    %17 = vector.broadcast %cst_12 : f32 to vector<8x128xf32>
    %18 = arith.cmpf ogt, %16, %17 : vector<8x128xf32>
    %cst_13 = arith.constant 2.000000e-01 : f32
    %19 = vector.broadcast %cst_13 : f32 to vector<8x128xf32>
    %20 = arith.mulf %19, %16 : vector<8x128xf32>
    %21 = arith.select %18, %16, %20 : vector<8x128xi1>, vector<8x128xf32>
    %c0_14 = arith.constant 0 : index
    %c0_15 = arith.constant 0 : index
    %22 = vector.load %arg6[%c0_14, %c0_15] : memref<1x128xf32, #tpu.memory_space<vmem>>, vector<1x128xf32>
    %cst_16 = arith.constant dense<0.000000e+00> : vector<1x8xf32>
    %23 = tpu.matmul %22, %21, %cst_16 {dimension_numbers = #tpu.dot_dimension_numbers<[1], [1], [0], [0], [0, 0, 1, 0], [], []>} : vector<1x128xf32>, vector<8x128xf32>, vector<1x8xf32> -> vector<1x8xf32>
    %c0_17 = arith.constant 0 : index
    %c0_18 = arith.constant 0 : index
    %24 = vector.load %arg7[%c0_17, %c0_18] : memref<1x1xf32, #tpu.memory_space<vmem>>, vector<1x1xf32>
    %25 = vector.broadcast %24 : vector<1x1xf32> to vector<1x8xf32>
    %26 = arith.addf %23, %25 : vector<1x8xf32>
    %c0_19 = arith.constant 0 : index
    %c0_20 = arith.constant 0 : index
    %27 = vector.load %arg8[%c0_19, %c0_20] : memref<1x8xf32, #tpu.memory_space<vmem>>, vector<1x8xf32>
    tpu.vector_store %arg8[%c0_19, %c0_20], %26 {strides = array<i32>} : memref<1x8xf32, #tpu.memory_space<vmem>>, vector<1x8xf32>,
    return
  }
  func.func @transform_0(%arg0: i32) -> (i32, i32) {
    %c0_i32 = arith.constant 0 : i32
    %c0_i32_0 = arith.constant 0 : i32
    return %arg0, %c0_i32 : i32, i32
  }
  func.func @transform_1(%arg0: i32) -> (i32, i32) {
    %c0_i32 = arith.constant 0 : i32
    %c0_i32_0 = arith.constant 0 : i32
    %c0_i32_1 = arith.constant 0 : i32
    return %c0_i32, %c0_i32_0 : i32, i32
  }
  func.func @transform_2(%arg0: i32) -> (i32, i32) {
    %c0_i32 = arith.constant 0 : i32
    %c0_i32_0 = arith.constant 0 : i32
    %c0_i32_1 = arith.constant 0 : i32
    return %c0_i32, %c0_i32_0 : i32, i32
  }
  func.func @transform_3(%arg0: i32) -> (i32, i32) {
    %c0_i32 = arith.constant 0 : i32
    %c0_i32_0 = arith.constant 0 : i32
    %c0_i32_1 = arith.constant 0 : i32
    return %c0_i32, %c0_i32_0 : i32, i32
  }
  func.func @transform_4(%arg0: i32) -> (i32, i32) {
    %c0_i32 = arith.constant 0 : i32
    %c0_i32_0 = arith.constant 0 : i32
    %c0_i32_1 = arith.constant 0 : i32
    return %c0_i32, %c0_i32_0 : i32, i32
  }
  func.func @transform_5(%arg0: i32) -> (i32, i32) {
    %c0_i32 = arith.constant 0 : i32
    %c0_i32_0 = arith.constant 0 : i32
    %c0_i32_1 = arith.constant 0 : i32
    return %c0_i32, %c0_i32_0 : i32, i32
  }
  func.func @transform_6(%arg0: i32) -> (i32, i32) {
    %c0_i32 = arith.constant 0 : i32
    %c0_i32_0 = arith.constant 0 : i32
    %c0_i32_1 = arith.constant 0 : i32
    return %c0_i32, %c0_i32_0 : i32, i32
  }
  func.func @transform_7(%arg0: i32) -> (i32, i32) {
    %c0_i32 = arith.constant 0 : i32
    %c0_i32_0 = arith.constant 0 : i32
    return %c0_i32, %arg0 : i32, i32
  }
}

</mosaic_0001>

<llo_original>
// kernel: tpu_custom_call.1
$region0: #{tpu_custom_call.1}
  #allocation0 [shape = 'u32[]', space=smem, size = 0x4, offset = 0x4, fixed_abs, tag = 'smem constant byte address 0x4 - core index']
  #allocation1 [shape = 'u32[144,128]{1,0:T(1,128)}', space=vmem, size = 0x12000, scoped, tag = 'internal scratch']
  #allocation2 [shape = 'f32[1,1]{1,0:T(1,128)S(1)}', space=vmem, size = 0x200, scoped, tag = 'scoped memory for tpu_custom_call.1']
  %s0 = inlined_call_operand.hbm [shape: bf16[8,80], index: 0, kind: input, shape index: {}]
  %s1 = inlined_call_operand.hbm [shape: bf16[80,128], index: 1, kind: input, shape index: {}]
  %s2 = inlined_call_operand.vmem [shape: f32[1,128], index: 2, kind: input, shape index: {}]
  %s3 = inlined_call_operand.hbm [shape: bf16[128,128], index: 3, kind: input, shape index: {}]
  %s4 = inlined_call_operand.vmem [shape: f32[1,128], index: 4, kind: input, shape index: {}]
  %s5 = inlined_call_operand.vmem [shape: f32[1,128], index: 5, kind: input, shape index: {}]
  %s6 = inlined_call_operand.<no memory space> [shape: f32[1,1], index: 6, kind: input, shape index: {}]
  %s7 = inlined_call_operand.hbm [shape: f32[1,8], index: 7, kind: output, shape index: {}]
  %s8 = sld [smem:[#allocation0]]
  $region50: #{tpu_custom_call.1} parent=0
    _
  %s10 = ssub.s32 1, %s8
  %s11 = scalar_select 0, %s10, %s8
  %v12 = vstv %s6
  %13 = vst [vmem:[#allocation2] sm:$0x1] %v12
  $region1: #{tpu_custom_call.1} parent=0
    #allocation3 [shape = 'u8[2048]{0}', space=vmem, size = 0x800, scoped, tag = 'input window, operand 0, single buffered']
    #allocation4 [shape = 's32[1]{0}', space=sflag, size = 0x4, scoped, tag = 'scoped memory for tpu_custom_call.1']
    #allocation5 [shape = 's32[1]{0}', space=sflag, size = 0x4, scoped, tag = 'scoped memory for tpu_custom_call.1']
    #allocation6 [shape = 'u8[20480]{0}', space=vmem, size = 0x5000, scoped, tag = 'input window, operand 1, single buffered']
    #allocation7 [shape = 's32[1]{0}', space=sflag, size = 0x4, scoped, tag = 'scoped memory for tpu_custom_call.1']
    #allocation8 [shape = 'u8[32768]{0}', space=vmem, size = 0x8000, scoped, tag = 'input window, operand 3, single buffered']
    #allocation9 [shape = 'u8[512]{0}', space=vmem, size = 0x400, scoped, tag = 'output window, operand 0, single buffered']
    %14 = vsyncpa [#allocation4], 0
    %15 = vsyncpa [#allocation7], 0
    %16 = vsyncpa [#allocation5], 0
    // Predicated region
    $region2: #{tpu_custom_call.1} parent=1 // pred_check
      _
    $region3: #{tpu_custom_call.1} parent=1 // pred_check_branch
      %18 = sbr.rel (0) target = $region5
    $region4: #{tpu_custom_call.1} parent=1 // pred_region
      %s20 = ssub.s32 64, 64
      %21 = vsyncadd [#allocation4], %s20
      %s23 = sshll.u32 [#allocation3], 4
      %s24 = int_to_ptr.vmem [resolvable:$true] %s23
      %26 = dma.hbm_to_vmem [thread:$0]  %s0, 64, %s24, [#allocation4]
    $region5: #{tpu_custom_call.1} parent=1 // pred_fallthru
      _
    // Predicated region
    $region6: #{tpu_custom_call.1} parent=1 // pred_check
      _
    $region7: #{tpu_custom_call.1} parent=1 // pred_check_branch
      %28 = sbr.rel (0) target = $region9
    $region8: #{tpu_custom_call.1} parent=1 // pred_region
      %s30 = ssub.s32 640, 640
      %31 = vsyncadd [#allocation7], %s30
      %s32 = sshll.u32 [#allocation6], 4
      %s33 = int_to_ptr.vmem [resolvable:$true] %s32
      %38 = dma.hbm_to_vmem [thread:$0]  %s1, 640, %s33, [#allocation7], 64, 64, 4
    $region9: #{tpu_custom_call.1} parent=1 // pred_fallthru
      _
    // Predicated region
    $region10: #{tpu_custom_call.1} parent=1 // pred_check
      _
    $region11: #{tpu_custom_call.1} parent=1 // pred_check_branch
      %40 = sbr.rel (0) target = $region13
    $region12: #{tpu_custom_call.1} parent=1 // pred_region
      _
    $region13: #{tpu_custom_call.1} parent=1 // pred_fallthru
      _
    // Predicated region
    $region14: #{tpu_custom_call.1} parent=1 // pred_check
      _
    $region15: #{tpu_custom_call.1} parent=1 // pred_check_branch
      %42 = sbr.rel (0) target = $region17
    $region16: #{tpu_custom_call.1} parent=1 // pred_region
      %s44 = ssub.s32 1024, 1024
      %45 = vsyncadd [#allocation7], %s44
      %s46 = sshll.u32 [#allocation8], 4
      %s47 = int_to_ptr.vmem [resolvable:$true] %s46
      %52 = dma.hbm_to_vmem [thread:$0]  %s3, 1024, %s47, [#allocation7], 64, 64, 4
    $region17: #{tpu_custom_call.1} parent=1 // pred_fallthru
      _
    // Predicated region
    $region18: #{tpu_custom_call.1} parent=1 // pred_check
      _
    $region19: #{tpu_custom_call.1} parent=1 // pred_check_branch
      %54 = sbr.rel (0) target = $region21
    $region20: #{tpu_custom_call.1} parent=1 // pred_region
      _
    $region21: #{tpu_custom_call.1} parent=1 // pred_fallthru
      _
    // Predicated region
    $region22: #{tpu_custom_call.1} parent=1 // pred_check
      _
    $region23: #{tpu_custom_call.1} parent=1 // pred_check_branch
      %56 = sbr.rel (0) target = $region25
    $region24: #{tpu_custom_call.1} parent=1 // pred_region
      _
    $region25: #{tpu_custom_call.1} parent=1 // pred_fallthru
      _
    // Predicated region
    $region26: #{tpu_custom_call.1} parent=1 // pred_check
      _
    $region27: #{tpu_custom_call.1} parent=1 // pred_check_branch
      %58 = sbr.rel (0) target = $region29
    $region28: #{tpu_custom_call.1} parent=1 // pred_region
      _
    $region29: #{tpu_custom_call.1} parent=1 // pred_fallthru
      _
    // Predicated region
    $region30: #{tpu_custom_call.1} parent=1 // pred_check
      _
    $region31: #{tpu_custom_call.1} parent=1 // pred_check_branch
      %60 = sbr.rel (0) target = $region33
    $region32: #{tpu_custom_call.1} parent=1 // pred_region
      %61 = dma.done [#allocation4], 64
    $region33: #{tpu_custom_call.1} parent=1 // pred_fallthru
      _
    // Predicated region
    $region34: #{tpu_custom_call.1} parent=1 // pred_check
      _
    $region35: #{tpu_custom_call.1} parent=1 // pred_check_branch
      %63 = sbr.rel (0) target = $region37
    $region36: #{tpu_custom_call.1} parent=1 // pred_region
      %64 = dma.done [#allocation7], 640
    $region37: #{tpu_custom_call.1} parent=1 // pred_fallthru
      _
    // Predicated region
    $region38: #{tpu_custom_call.1} parent=1 // pred_check
      _
    $region39: #{tpu_custom_call.1} parent=1 // pred_check_branch
      %66 = sbr.rel (0) target = $region41
    $region40: #{tpu_custom_call.1} parent=1 // pred_region
      %67 = dma.done [#allocation7], 1024
    $region41: #{tpu_custom_call.1} parent=1 // pred_fallthru
      _
    %v69 = vld [vmem:[#allocation3] sm:$0xf]
    %v70 = vld [vmem:[#allocation6] sm:$0xf]
    %v71 = vld [vmem:[#allocation6 + $0x4] sm:$0xf]
    %v72 = vld [vmem:[#allocation6 + $0x8] sm:$0xf]
    %v73 = vld [vmem:[#allocation6 + $0xc] sm:$0xf]
    %v74 = vld [vmem:[#allocation6 + $0x10] sm:$0xf]
    %v75 = vld [vmem:[#allocation6 + $0x14] sm:$0xf]
    %v76 = vld [vmem:[#allocation6 + $0x18] sm:$0xf]
    %v77 = vld [vmem:[#allocation6 + $0x1c] sm:$0xf]
    %v78 = vld [vmem:[#allocation6 + $0x20] sm:$0xf]
    %v79 = vld [vmem:[#allocation6 + $0x24] sm:$0xf]
    %v80 = vld [vmem:[%s2] sm:$0x1]
    %v82 = vlaneseq
    %v83 = vshrl.u32 %v82, 7
    %v84 = vsub.s32 0, %v83
    %v85 = vrot.slane %v80, %v84
    %v97 = vunpack.c.l.b16 %v70
    %v98 = vunpack.c.l.b16 %v71
    %v99 = vunpack.c.l.b16 %v72
    %v100 = vunpack.c.l.b16 %v73
    %v101 = vunpack.c.l.b16 %v74
    %v102 = vunpack.c.l.b16 %v75
    %v103 = vunpack.c.l.b16 %v76
    %v104 = vunpack.c.l.b16 %v77
    %v105 = vunpack.c.l.b16 %v78
    %v106 = vunpack.c.l.b16 %v79
    %v107 = vpack.c.b16 %v98, %v97
    %v108 = vpack.c.b16 %v100, %v99
    %v109 = vpack.c.b16 %v102, %v101
    %v110 = vpack.c.b16 %v104, %v103
    %v111 = vpack.c.b16 %v106, %v105
    %vm117 = vcmask 654336
    %v119 = vsel %vm117, %v69, 0
    %121 = vmatprep.subr.bf16.mxu0 0
    %122 = vmatpush1.bf16.msra.mxu0 %v107
    %123 = vmatprep.subr.bf16.mxu0 0
    %124 = vmatpush1.bf16.msra.mxu0 %v108
    %125 = vmatprep.subr.bf16.mxu0 0
    %126 = vmatpush1.bf16.msra.mxu0 %v109
    %127 = vmatprep.subr.bf16.mxu0 0
    %128 = vmatpush1.bf16.msra.mxu0 %v110
    %129 = vmatprep.subr.bf16.mxu0 0
    %130 = vmatpush1.bf16.msra.mxu0 %v111
    %131 = vmatprep.subr.bf16.mxu0 0
    %132 = vmatpush1.bf16.msra.mxu0 0
    %133 = vmatprep.subr.bf16.mxu0 0
    %134 = vmatpush1.bf16.msra.mxu0 0
    %135 = vmatprep.subr.bf16.mxu0 0
    %136 = vmatpush1.bf16.msra.mxu0 0
    %137 = vmatprep.subr.bf16.mxu0 0
    %138 = vmatpush1.bf16.msra.mxu0 0
    %139 = vmatprep.subr.bf16.mxu0 0
    %140 = vmatpush1.bf16.msra.mxu0 0
    %141 = vmatprep.subr.bf16.mxu0 0
    %142 = vmatpush1.bf16.msra.mxu0 0
    %143 = vmatprep.subr.bf16.mxu0 0
    %144 = vmatpush1.bf16.msra.mxu0 0
    %145 = vmatprep.subr.bf16.mxu0 0
    %146 = vmatpush1.bf16.msra.mxu0 0
    %147 = vmatprep.subr.bf16.mxu0 0
    %148 = vmatpush1.bf16.msra.mxu0 0
    %149 = vmatprep.subr.bf16.mxu0 0
    %150 = vmatpush1.bf16.msra.mxu0 0
    %151 = vmatprep.subr.bf16.mxu0 0
    %152 = vmatpush1.bf16.msra.mxu0 0
    %153 = vmatprep.mubr.bf16.mxu0 0
    %154 = vmatmul.mubr.bf16.gmra.mrb[0].mxu0 %v119
    %v155 = vpop.f32.mrb[0].mxu0
    %v156 = vadd.f32 %v85, %v155
    %v157 = vpop.f32.mrb[0].mxu0
    %v158 = vpop.f32.mrb[0].mxu0
    %v159 = vpop.f32.mrb[0].mxu0
    %160 = vdwg.mxu0
    %vm161 = vcmp.gt.f32.partialorder %v156, 0.0
    %v162 = vmul.f32 %v156, 0.2
    %v163 = vsel %vm161, %v156, %v162
    %v164 = vpack.c.bf16 %v163, %v163
    %v165 = vld [vmem:[#allocation8] sm:$0xf]
    %v166 = vld [vmem:[#allocation8 + $0x4] sm:$0xf]
    %v167 = vld [vmem:[#allocation8 + $0x8] sm:$0xf]
    %v168 = vld [vmem:[#allocation8 + $0xc] sm:$0xf]
    %v169 = vld [vmem:[#allocation8 + $0x10] sm:$0xf]
    %v170 = vld [vmem:[#allocation8 + $0x14] sm:$0xf]
    %v171 = vld [vmem:[#allocation8 + $0x18] sm:$0xf]
    %v172 = vld [vmem:[#allocation8 + $0x1c] sm:$0xf]
    %v173 = vld [vmem:[#allocation8 + $0x20] sm:$0xf]
    %v174 = vld [vmem:[#allocation8 + $0x24] sm:$0xf]
    %v175 = vld [vmem:[#allocation8 + $0x28] sm:$0xf]
    %v176 = vld [vmem:[#allocation8 + $0x2c] sm:$0xf]
    %v177 = vld [vmem:[#allocation8 + $0x30] sm:$0xf]
    %v178 = vld [vmem:[#allocation8 + $0x34] sm:$0xf]
    %v179 = vld [vmem:[#allocation8 + $0x38] sm:$0xf]
    %v180 = vld [vmem:[#allocation8 + $0x3c] sm:$0xf]
    %v181 = vld [vmem:[%s4] sm:$0x1]
    %v183 = vlaneseq
    %v184 = vshrl.u32 %v183, 7
    %v185 = vsub.s32 0, %v184
    %v186 = vrot.slane %v181, %v185
    %v204 = vunpack.c.l.b16 %v165
    %v205 = vunpack.c.l.b16 %v166
    %v206 = vunpack.c.l.b16 %v167
    %v207 = vunpack.c.l.b16 %v168
    %v208 = vunpack.c.l.b16 %v169
    %v209 = vunpack.c.l.b16 %v170
    %v210 = vunpack.c.l.b16 %v171
    %v211 = vunpack.c.l.b16 %v172
    %v212 = vunpack.c.l.b16 %v173
    %v213 = vunpack.c.l.b16 %v174
    %v214 = vunpack.c.l.b16 %v175
    %v215 = vunpack.c.l.b16 %v176
    %v216 = vunpack.c.l.b16 %v177
    %v217 = vunpack.c.l.b16 %v178
    %v218 = vunpack.c.l.b16 %v179
    %v219 = vunpack.c.l.b16 %v180
    %v220 = vpack.c.b16 %v205, %v204
    %v221 = vpack.c.b16 %v207, %v206
    %v222 = vpack.c.b16 %v209, %v208
    %v223 = vpack.c.b16 %v211, %v210
    %v224 = vpack.c.b16 %v213, %v212
    %v225 = vpack.c.b16 %v215, %v214
    %v226 = vpack.c.b16 %v217, %v216
    %v227 = vpack.c.b16 %v219, %v218
    %236 = vmatprep.subr.bf16.mxu0 0
    %237 = vmatpush1.bf16.msra.mxu0 %v220
    %238 = vmatprep.subr.bf16.mxu0 0
    %239 = vmatpush1.bf16.msra.mxu0 %v221
    %240 = vmatprep.subr.bf16.mxu0 0
    %241 = vmatpush1.bf16.msra.mxu0 %v222
    %242 = vmatprep.subr.bf16.mxu0 0
    %243 = vmatpush1.bf16.msra.mxu0 %v223
    %244 = vmatprep.subr.bf16.mxu0 0
    %245 = vmatpush1.bf16.msra.mxu0 %v224
    %246 = vmatprep.subr.bf16.mxu0 0
    %247 = vmatpush1.bf16.msra.mxu0 %v225
    %248 = vmatprep.subr.bf16.mxu0 0
    %249 = vmatpush1.bf16.msra.mxu0 %v226
    %250 = vmatprep.subr.bf16.mxu0 0
    %251 = vmatpush1.bf16.msra.mxu0 %v227
    %252 = vmatprep.subr.bf16.mxu0 0
    %253 = vmatpush1.bf16.msra.mxu0 0
    %254 = vmatprep.subr.bf16.mxu0 0
    %255 = vmatpush1.bf16.msra.mxu0 0
    %256 = vmatprep.subr.bf16.mxu0 0
    %257 = vmatpush1.bf16.msra.mxu0 0
    %258 = vmatprep.subr.bf16.mxu0 0
    %259 = vmatpush1.bf16.msra.mxu0 0
    %260 = vmatprep.subr.bf16.mxu0 0
    %261 = vmatpush1.bf16.msra.mxu0 0
    %262 = vmatprep.subr.bf16.mxu0 0
    %263 = vmatpush1.bf16.msra.mxu0 0
    %264 = vmatprep.subr.bf16.mxu0 0
    %265 = vmatpush1.bf16.msra.mxu0 0
    %266 = vmatprep.subr.bf16.mxu0 0
    %267 = vmatpush1.bf16.msra.mxu0 0
    %268 = vmatprep.mubr.bf16.mxu0 0
    %269 = vmatmul.mubr.bf16.gmra.mrb[0].mxu0 %v164
    %v270 = vpop.f32.mrb[0].mxu0
    %v271 = vadd.f32 %v186, %v270
    %v272 = vpop.f32.mrb[0].mxu0
    %v273 = vpop.f32.mrb[0].mxu0
    %v274 = vpop.f32.mrb[0].mxu0
    %275 = vdwg.mxu0
    %vm276 = vcmp.gt.f32.partialorder %v271, 0.0
    %v277 = vmul.f32 %v271, 0.2
    %v278 = vsel %vm276, %v271, %v277
    %v279 = vld [vmem:[%s5] sm:$0x1]
    %v280 = vld [vmem:[#allocation2] sm:$0x1]
    %282 = vset.pattern.permute.xlu0 0
    %283 = vperm.xlu0 %282, %v280
    %v284 = vpop.permute.xlu0 %283
    %v286 = vlaneseq
    %v287 = vshrl.u32 %v286, 7
    %v288 = vsub.s32 0, %v287
    %v289 = vrot.slane %v284, %v288
    %290 = vmatprep.subr.mxu0 0.0
    %291 = vmatpush1.xpose.msra.mxu0 %v278
    %292 = vmatprep.subr.mxu0 0.0
    %293 = vmatpush1.xpose.msra.mxu0 0.0
    %294 = vmatprep.subr.mxu0 0.0
    %295 = vmatpush1.xpose.msra.mxu0 0.0
    %296 = vmatprep.subr.mxu0 0.0
    %297 = vmatpush1.xpose.msra.mxu0 0.0
    %298 = vmatprep.subr.mxu0 0.0
    %299 = vmatpush1.xpose.msra.mxu0 0.0
    %300 = vmatprep.subr.mxu0 0.0
    %301 = vmatpush1.xpose.msra.mxu0 0.0
    %302 = vmatprep.subr.mxu0 0.0
    %303 = vmatpush1.xpose.msra.mxu0 0.0
    %304 = vmatprep.subr.mxu0 0.0
    %305 = vmatpush1.xpose.msra.mxu0 0.0
    %306 = vmatprep.subr.mxu0 0.0
    %307 = vmatpush1.xpose.msra.mxu0 0.0
    %308 = vmatprep.subr.mxu0 0.0
    %309 = vmatpush1.xpose.msra.mxu0 0.0
    %310 = vmatprep.subr.mxu0 0.0
    %311 = vmatpush1.xpose.msra.mxu0 0.0
    %312 = vmatprep.subr.mxu0 0.0
    %313 = vmatpush1.xpose.msra.mxu0 0.0
    %314 = vmatprep.subr.mxu0 0.0
    %315 = vmatpush1.xpose.msra.mxu0 0.0
    %316 = vmatprep.subr.mxu0 0.0
    %317 = vmatpush1.xpose.msra.mxu0 0.0
    %318 = vmatprep.subr.mxu0 0.0
    %319 = vmatpush1.xpose.msra.mxu0 0.0
    %320 = vmatprep.subr.mxu0 0.0
    %321 = vmatpush1.xpose.msra.mxu0 0.0
    %322 = vmatprep.subr.mxu0 0.0
    %323 = vmatpush1.xpose.msra.mxu0 0.0
    %324 = vmatprep.subr.mxu0 0.0
    %325 = vmatpush1.xpose.msra.mxu0 0.0
    %326 = vmatprep.subr.mxu0 0.0
    %327 = vmatpush1.xpose.msra.mxu0 0.0
    %328 = vmatprep.subr.mxu0 0.0
    %329 = vmatpush1.xpose.msra.mxu0 0.0
    %330 = vmatprep.subr.mxu0 0.0
    %331 = vmatpush1.xpose.msra.mxu0 0.0
    %332 = vmatprep.subr.mxu0 0.0
    %333 = vmatpush1.xpose.msra.mxu0 0.0
    %334 = vmatprep.subr.mxu0 0.0
    %335 = vmatpush1.xpose.msra.mxu0 0.0
    %336 = vmatprep.subr.mxu0 0.0
    %337 = vmatpush1.xpose.msra.mxu0 0.0
    %338 = vmatprep.subr.mxu0 0.0
    %339 = vmatpush1.xpose.msra.mxu0 0.0
    %340 = vmatprep.subr.mxu0 0.0
    %341 = vmatpush1.xpose.msra.mxu0 0.0
    %342 = vmatprep.subr.mxu0 0.0
    %343 = vmatpush1.xpose.msra.mxu0 0.0
    %344 = vmatprep.subr.mxu0 0.0
    %345 = vmatpush1.xpose.msra.mxu0 0.0
    %346 = vmatprep.subr.mxu0 0.0
    %347 = vmatpush1.xpose.msra.mxu0 0.0
    %348 = vmatprep.subr.mxu0 0.0
    %349 = vmatpush1.xpose.msra.mxu0 0.0
    %350 = vmatprep.subr.mxu0 0.0
    %351 = vmatpush1.xpose.msra.mxu0 0.0
    %352 = vmatprep.subr.mxu0 0.0
    %353 = vmatpush1.xpose.msra.mxu0 0.0
    %354 = vmatprep.mubr.f32.mxu0 0.0
    %355 = vmatmul.mubr.f32.gmra.mrb[0].mxu0 %v279
    %v356 = vpop.f32.mrb[0].mxu0
    %v357 = vadd.f32 %v289, %v356
    %v358 = vpop.f32.mrb[0].mxu0
    %359 = vdwg.mxu0
    %vm360 = vcmask 57344
    %361 = vst.msk [vmem:[#allocation9] sm:$0x1] %vm360, %v357
    // Predicated region
    $region42: #{tpu_custom_call.1} parent=1 // pred_check
      _
    $region43: #{tpu_custom_call.1} parent=1 // pred_check_branch
      %363 = sbr.rel (0) target = $region45
    $region44: #{tpu_custom_call.1} parent=1 // pred_region
      %s365 = ssub.s32 16, 16
      %366 = vsyncadd [#allocation5], %s365
      %s368 = sshll.u32 [#allocation9], 4
      %s369 = int_to_ptr.vmem [resolvable:$true] %s368
      %371 = dma.vmem_to_hbm [thread:$0]  %s369, 16, %s7, [#allocation5]
    $region45: #{tpu_custom_call.1} parent=1 // pred_fallthru
      _
    // Predicated region
    $region46: #{tpu_custom_call.1} parent=1 // pred_check
      _
    $region47: #{tpu_custom_call.1} parent=1 // pred_check_branch
      %373 = sbr.rel (0) target = $region49
    $region48: #{tpu_custom_call.1} parent=1 // pred_region
      %374 = dma.done [#allocation5], 16
    $region49: #{tpu_custom_call.1} parent=1 // pred_fallthru
      _
    %375 = vsyncpa [#allocation4], 1
    %376 = vsyncpa [#allocation7], 1
    %377 = vsyncpa [#allocation5], 1

</llo_original>
